<compile_context>
chip_gen: v7x
topology: tpu7x:2x2x1
jax: 0.10.0
libtpu: 0.0.40
codegen_flags: <defaults>
</compile_context>

<pallas_src>
import jax
import jax.numpy as jnp
from jax.experimental import pallas as pl
from jax.experimental.pallas import tpu as pltpu

BN_EPS = 1e-5
NEG_SLOPE = 0.2
LANE = 128
SUBLANE = 8


def _leaky_relu(x, slope):
    return jnp.where(x > 0, x, slope * x)


def _round_up(x, m):
    return ((x + m - 1) // m) * m


def _pad2d(a, rows, cols):
    out = jnp.zeros((rows, cols), a.dtype)
    return out.at[: a.shape[0], : a.shape[1]].set(a)


# ---------------------------------------------------------------------------
# Fused kernel: whole forward pass in one pallas_call.
#   agg1 = A @ X + (1+eps1) * X
#   h1   = leaky_relu( agg1 @ W1' + b1' )          (BN1 folded into W1', b1')
#   agg2 = A @ h1 + (1+eps2) * h1
#   h2   = leaky_relu( agg2 @ W2' + b2' )          (BN2 folded into W2', b2')
#   x_out  = leaky_relu( h2 @ Wm + bm )
#   pooled = P @ x_out                              (global mean pool)
#   c      = relu( pooled @ Wc1 + bc1 )
#   class_out = c @ Wc2' + bc2'                     (classifier BN folded)
# Inputs: eps in SMEM; A, X, W1, Wcat=[W2|Wm|Wc1], pool, Wc2, bias-pack in VMEM.
# ---------------------------------------------------------------------------
def fused_gin_kernel(eps_ref, a_ref, x_ref, w1_ref, wcat_ref, pool_ref,
                     wc2_ref, bias_ref, x_out_ref, class_out_ref):
    h_p = x_out_ref.shape[1]          # padded hidden width (128-multiple)
    c_p = class_out_ref.shape[1]      # padded class width  (128-multiple)

    a = a_ref[...]
    x = x_ref[...]

    # ----- GIN layer 1 (eps self-term on the VPU; BN1 folded into W1/b1) -----
    agg = jnp.dot(a, x, preferred_element_type=jnp.float32) + (1.0 + eps_ref[0]) * x
    h = jnp.dot(agg, w1_ref[...], preferred_element_type=jnp.float32) + bias_ref[0:1, :h_p]
    h = _leaky_relu(h, NEG_SLOPE)

    # ----- GIN layer 2 -----
    agg = jnp.dot(a, h, preferred_element_type=jnp.float32) + (1.0 + eps_ref[1]) * h
    h = jnp.dot(agg, wcat_ref[:, 0:h_p], preferred_element_type=jnp.float32) + bias_ref[1:2, :h_p]
    h = _leaky_relu(h, NEG_SLOPE)

    # ----- merge Linear + leaky_relu -----
    x_m = jnp.dot(h, wcat_ref[:, h_p:2 * h_p],
                  preferred_element_type=jnp.float32) + bias_ref[2:3, :h_p]
    x_m = _leaky_relu(x_m, NEG_SLOPE)
    x_out_ref[...] = x_m                               # lane-dense [N_p, 128]

    # ----- global mean pool + classification MLP -----
    pooled = jnp.dot(pool_ref[...], x_m, preferred_element_type=jnp.float32)
    c = jnp.dot(pooled, wcat_ref[:, 2 * h_p:3 * h_p],
                preferred_element_type=jnp.float32) + bias_ref[3:4, :h_p]
    c = jnp.maximum(c, 0.0)                            # ReLU
    class_out_ref[...] = (
        jnp.dot(c, wc2_ref[...], preferred_element_type=jnp.float32)
        + bias_ref[4:5, :c_p]
    )                                                  # lane-dense [B_p, 128]


def _fused_call(eps, a, x, w1, wcat, pool, wc2, biases):
    n_p, f_p = x.shape
    h_p = w1.shape[1]
    b_p = pool.shape[0]
    c_p = wc2.shape[1]

    flops = 2 * (n_p * n_p * f_p          # A @ X
                 + n_p * f_p * h_p        # @ W1
                 + n_p * n_p * h_p        # A @ h1
                 + 2 * n_p * h_p * h_p    # @ W2, @ Wm
                 + b_p * n_p * h_p        # pool @ x
                 + b_p * h_p * h_p        # @ Wc1
                 + b_p * h_p * c_p)       # @ Wc2
    in_arrays = (eps, a, x, w1, wcat, pool, wc2, biases)
    bytes_accessed = sum(int(v.size) * v.dtype.itemsize for v in in_arrays)
    bytes_accessed += (n_p * h_p + b_p * c_p) * 4      # outputs

    vmem = pl.BlockSpec(memory_space=pltpu.MemorySpace.VMEM)
    smem = pl.BlockSpec(memory_space=pltpu.MemorySpace.SMEM)
    return pl.pallas_call(
        fused_gin_kernel,
        out_shape=(jax.ShapeDtypeStruct((n_p, h_p), jnp.float32),
                   jax.ShapeDtypeStruct((b_p, c_p), jnp.float32)),
        in_specs=[smem] + [vmem] * 7,
        out_specs=(vmem, vmem),
        compiler_params=pltpu.CompilerParams(vmem_limit_bytes=32 * 1024 * 1024),
        cost_estimate=pl.CostEstimate(flops=flops, transcendentals=0,
                                      bytes_accessed=bytes_accessed),
    )(eps, a, x, w1, wcat, pool, wc2, biases)


# ---------------------------------------------------------------------------
# ONE-TIME parameter preparation (hoisted out of the forward path):
# fold eval-mode BN into adjacent Linears, pack biases, concat HxH weights,
# zero-pad to lane/sublane-dense shapes.
# ---------------------------------------------------------------------------
def prepare_kernel_params(params):
    p = params
    f = p["w1_t"].shape[0]
    hidden = p["w1_t"].shape[1]
    num_classes = p["wc2_t"].shape[1]

    f_p = _round_up(f, SUBLANE)        # K of the first matmul stays small (no 128 pad)
    h_p = _round_up(hidden, LANE)
    c_p = _round_up(num_classes, LANE)
    bias_w = max(h_p, c_p)

    # Fold eval-mode BN that directly follows a Linear into that Linear.
    def fold_post_bn(w_t, bias, g, beta, m, v):
        s = g * jax.lax.rsqrt(v + BN_EPS)              # (1, H)
        return w_t * s, (bias - m) * s + beta

    w1f, b1f = fold_post_bn(p["w1_t"], p["b1"], p["bn1_g"], p["bn1_b"],
                            p["bn1_m"], p["bn1_v"])
    w2f, b2f = fold_post_bn(p["w2_t"], p["b2"], p["bn2_g"], p["bn2_b"],
                            p["bn2_m"], p["bn2_v"])

    # Classifier BN sits AFTER the ReLU -> fold into the FOLLOWING Linear:
    #   BN(r) @ W2 + b2 = r @ (s^T * W2) + (t @ W2 + b2),  r = ReLU(Lin1(pooled))
    s_c = p["bnc_g"] * jax.lax.rsqrt(p["bnc_v"] + BN_EPS)   # (1, H)
    t_c = p["bnc_b"] - p["bnc_m"] * s_c                     # (1, H)
    wc2f = p["wc2_t"] * s_c.T                               # (H, C)
    bc2f = p["bc2"] + t_c @ p["wc2_t"]                      # (1, C)

    # Concatenate the three HxH weights into one (h_p, 3*h_p) buffer.
    wcat = jnp.concatenate([_pad2d(w2f, h_p, h_p),
                            _pad2d(p["wm_t"], h_p, h_p),
                            _pad2d(p["wc1_t"], h_p, h_p)], axis=1)

    # Pack the five bias vectors into one (8, bias_w) tile (rows 0..4).
    biases = jnp.zeros((SUBLANE, bias_w), jnp.float32)
    for i, (vec, width) in enumerate([(b1f, hidden), (b2f, hidden),
                                      (p["bm"], hidden), (p["bc1"], hidden),
                                      (bc2f, num_classes)]):
        biases = biases.at[i:i + 1, :width].set(vec)

    eps = jnp.concatenate([p["eps1"], p["eps2"]]).astype(jnp.float32)   # (2,) SMEM

    return {
        "eps": eps,
        "w1": _pad2d(w1f, f_p, h_p),
        "wcat": wcat,
        "wc2": _pad2d(wc2f, h_p, c_p),
        "biases": biases,
        "hidden": hidden,
        "num_classes": num_classes,
        "f_p": f_p,
    }


# ONE-TIME per-graph padding (adjacency already contains explicit self loops).
def prepare_graph_inputs(x_exp, adj, pool, f_p):
    n, _ = x_exp.shape
    b = pool.shape[0]
    n_p = _round_up(n, SUBLANE)
    b_p = _round_up(b, SUBLANE)
    return (_pad2d(adj, n_p, n_p),
            _pad2d(x_exp, n_p, f_p),
            _pad2d(pool, b_p, n_p))


# ---------------------------------------------------------------------------
# Forward path: nothing but the pallas_call plus two output slices.
# ---------------------------------------------------------------------------
def gin_model_forward(kparams, adj_p, x_p, pool_p, n, b):
    x_out_p, class_out_p = _fused_call(
        kparams["eps"], adj_p, x_p, kparams["w1"], kparams["wcat"],
        pool_p, kparams["wc2"], kparams["biases"])
    return (x_out_p[:n, :kparams["hidden"]],
            class_out_p[:b, :kparams["num_classes"]])


# ---------------------------------------------------------------------------
# Pure-JAX reference (unfused, unpadded) for sanity checking.
# ---------------------------------------------------------------------------
def reference_forward(params, x_exp, adj, pool):
    p = params

    def gin(a, x, w_t, bias, eps, g, bt, m, v):
        z = ((1.0 + eps[0]) * x + a @ x) @ w_t + bias
        z = (z - m) / jnp.sqrt(v + BN_EPS) * g + bt
        return jnp.where(z > 0, z, NEG_SLOPE * z)

    x = gin(adj, x_exp, p["w1_t"], p["b1"], p["eps1"],
            p["bn1_g"], p["bn1_b"], p["bn1_m"], p["bn1_v"])
    x = gin(adj, x, p["w2_t"], p["b2"], p["eps2"],
            p["bn2_g"], p["bn2_b"], p["bn2_m"], p["bn2_v"])
    z = x @ p["wm_t"] + p["bm"]
    x = jnp.where(z > 0, z, NEG_SLOPE * z)
    pooled = pool @ x
    hcl = jnp.maximum(pooled @ p["wc1_t"] + p["bc1"], 0.0)
    hcl = (hcl - p["bnc_m"]) / jnp.sqrt(p["bnc_v"] + BN_EPS) * p["bnc_g"] + p["bnc_b"]
    return x, hcl @ p["wc2_t"] + p["bc2"]


def init_params(key, num_features, hidden, num_classes):
    ks = jax.random.split(key, 8)

    def lin(k, fan_in, fan_out):
        w = jax.random.normal(k, (fan_out, fan_in), jnp.float32) * (1.0 / jnp.sqrt(fan_in))
        return w.T  # stored as [in, out] for x @ W

    params = {
        # GIN conv1 / conv2 (Linear nn inside GINConv), eps init 0 (train_eps=True)
        "w1_t": lin(ks[0], num_features, hidden), "b1": jnp.zeros((1, hidden), jnp.float32),
        "eps1": jnp.zeros((1,), jnp.float32),
        "w2_t": lin(ks[1], hidden, hidden), "b2": jnp.zeros((1, hidden), jnp.float32),
        "eps2": jnp.zeros((1,), jnp.float32),
        # BatchNorm1d bn1/bn2 (PyTorch default init, eval-mode running stats)
        "bn1_g": jnp.ones((1, hidden), jnp.float32), "bn1_b": jnp.zeros((1, hidden), jnp.float32),
        "bn1_m": jnp.zeros((1, hidden), jnp.float32), "bn1_v": jnp.ones((1, hidden), jnp.float32),
        "bn2_g": jnp.ones((1, hidden), jnp.float32), "bn2_b": jnp.zeros((1, hidden), jnp.float32),
        "bn2_m": jnp.zeros((1, hidden), jnp.float32), "bn2_v": jnp.ones((1, hidden), jnp.float32),
        # merge Linear (xavier_uniform in torch; deterministic normal here)
        "wm_t": lin(ks[2], hidden, hidden), "bm": jnp.zeros((1, hidden), jnp.float32),
        # mlp_class: Linear(H,H) -> ReLU -> BN -> Dropout -> Linear(H,C)
        "wc1_t": lin(ks[3], hidden, hidden), "bc1": jnp.zeros((1, hidden), jnp.float32),
        "bnc_g": jnp.ones((1, hidden), jnp.float32), "bnc_b": jnp.zeros((1, hidden), jnp.float32),
        "bnc_m": jnp.zeros((1, hidden), jnp.float32), "bnc_v": jnp.ones((1, hidden), jnp.float32),
        "wc2_t": lin(ks[4], hidden, num_classes), "bc2": jnp.zeros((1, num_classes), jnp.float32),
    }
    return params


if __name__ == "__main__":
    key = jax.random.PRNGKey(0)
    NUM_FEATURES, HIDDEN, NUM_CLASSES = 8, 32, 3
    N_NODES, N_GRAPHS = 16, 2  # 8 nodes per graph

    k_x, k_p = jax.random.split(key)
    x_exp = jax.random.normal(k_x, (N_NODES, NUM_FEATURES), jnp.float32)

    # Deterministic edge_index: a ring inside each graph of 8 nodes.
    src, dst = [], []
    per = N_NODES // N_GRAPHS
    for g in range(N_GRAPHS):
        for i in range(per):
            a_i = g * per + i
            b_i = g * per + (i + 1) % per
            src += [a_i, b_i]
            dst += [b_i, a_i]
    edge_index = jnp.array([src, dst], dtype=jnp.int32)       # [2, 32]
    batch = jnp.repeat(jnp.arange(N_GRAPHS, dtype=jnp.int32), per)

    # Dense adjacency with self loops (add_self_loops): A[dst, src] += 1, plus identity.
    adj = jnp.zeros((N_NODES, N_NODES), jnp.float32).at[edge_index[1], edge_index[0]].add(1.0)
    adj = adj + jnp.eye(N_NODES, dtype=jnp.float32)

    # Mean-pool matrix P[g, i] = 1/count_g for nodes of graph g.
    onehot = (batch[None, :] == jnp.arange(N_GRAPHS)[:, None]).astype(jnp.float32)  # [B, N]
    pool = onehot / jnp.sum(onehot, axis=1, keepdims=True)

    params = init_params(k_p, NUM_FEATURES, HIDDEN, NUM_CLASSES)

    # One-time preparation (hoisted out of the per-call forward path).
    kparams = prepare_kernel_params(params)
    adj_p, x_p, pool_p = prepare_graph_inputs(x_exp, adj, pool, kparams["f_p"])
    jax.block_until_ready((kparams["w1"], adj_p, x_p, pool_p))

    # Forward path: single fused pallas_call + output slices.
    x_out, class_out = gin_model_forward(kparams, adj_p, x_p, pool_p, N_NODES, N_GRAPHS)
    jax.block_until_ready((x_out, class_out))

    x_ref, c_ref = reference_forward(params, x_exp, adj, pool)
    assert x_out.shape == (N_NODES, HIDDEN) and class_out.shape == (N_GRAPHS, NUM_CLASSES)
    assert jnp.allclose(x_out, x_ref, rtol=1e-4, atol=1e-4)
    assert jnp.allclose(class_out, c_ref, rtol=1e-4, atol=1e-4)

    print("KERNEL_OK")
</pallas_src>

<mosaic_0001>
module attributes {stable_mosaic.version = 11 : i64} {
  func.func @fused_gin_kernel(%arg0: memref<2xf32, #tpu.memory_space<smem>>, %arg1: memref<16x16xf32, #tpu.memory_space<vmem>>, %arg2: memref<16x8xf32, #tpu.memory_space<vmem>>, %arg3: memref<8x128xf32, #tpu.memory_space<vmem>>, %arg4: memref<128x384xf32, #tpu.memory_space<vmem>>, %arg5: memref<8x16xf32, #tpu.memory_space<vmem>>, %arg6: memref<128x128xf32, #tpu.memory_space<vmem>>, %arg7: memref<8x128xf32, #tpu.memory_space<vmem>>, %arg8: memref<16x128xf32, #tpu.memory_space<vmem>>, %arg9: memref<8x128xf32, #tpu.memory_space<vmem>>) attributes {dimension_semantics = [], scalar_prefetch = 0 : i64, scratch_operands = 0 : i64, tpu.core_type = #tpu.core_type<tc>} {
    %c0 = arith.constant 0 : index
    %c0_0 = arith.constant 0 : index
    %0 = vector.load %arg1[%c0, %c0_0] : memref<16x16xf32, #tpu.memory_space<vmem>>, vector<16x16xf32>
    %c0_1 = arith.constant 0 : index
    %c0_2 = arith.constant 0 : index
    %1 = vector.load %arg2[%c0_1, %c0_2] : memref<16x8xf32, #tpu.memory_space<vmem>>, vector<16x8xf32>
    %cst = arith.constant dense<0.000000e+00> : vector<16x8xf32>
    %2 = tpu.matmul %0, %1, %cst {dimension_numbers = #tpu.dot_dimension_numbers<[1], [0], [0], [1], [0, 0, 1, 1], [], []>} : vector<16x16xf32>, vector<16x8xf32>, vector<16x8xf32> -> vector<16x8xf32>
    %c0_3 = arith.constant 0 : index
    %3 = memref.load %arg0[%c0_3] : memref<2xf32, #tpu.memory_space<smem>>
    %cst_4 = arith.constant 1.000000e+00 : f32
    %4 = arith.addf %cst_4, %3 : f32
    %5 = vector.broadcast %4 : f32 to vector<16x8xf32>
    %6 = arith.mulf %5, %1 : vector<16x8xf32>
    %7 = arith.addf %2, %6 : vector<16x8xf32>
    %c0_5 = arith.constant 0 : index
    %c0_6 = arith.constant 0 : index
    %8 = vector.load %arg3[%c0_5, %c0_6] : memref<8x128xf32, #tpu.memory_space<vmem>>, vector<8x128xf32>
    %cst_7 = arith.constant dense<0.000000e+00> : vector<16x128xf32>
    %9 = tpu.matmul %7, %8, %cst_7 {dimension_numbers = #tpu.dot_dimension_numbers<[1], [0], [0], [1], [0, 0, 1, 1], [], []>} : vector<16x8xf32>, vector<8x128xf32>, vector<16x128xf32> -> vector<16x128xf32>
    %c0_8 = arith.constant 0 : index
    %c0_9 = arith.constant 0 : index
    %10 = vector.load %arg7[%c0_8, %c0_9] : memref<8x128xf32, #tpu.memory_space<vmem>>, vector<1x128xf32>
    %11 = vector.broadcast %10 : vector<1x128xf32> to vector<16x128xf32>
    %12 = arith.addf %9, %11 : vector<16x128xf32>
    %cst_10 = arith.constant 0.000000e+00 : f32
    %13 = vector.broadcast %cst_10 : f32 to vector<16x128xf32>
    %14 = arith.cmpf ogt, %12, %13 : vector<16x128xf32>
    %cst_11 = arith.constant 2.000000e-01 : f32
    %15 = vector.broadcast %cst_11 : f32 to vector<16x128xf32>
    %16 = arith.mulf %15, %12 : vector<16x128xf32>
    %17 = arith.select %14, %12, %16 : vector<16x128xi1>, vector<16x128xf32>
    %cst_12 = arith.constant dense<0.000000e+00> : vector<16x128xf32>
    %18 = tpu.matmul %0, %17, %cst_12 {dimension_numbers = #tpu.dot_dimension_numbers<[1], [0], [0], [1], [0, 0, 1, 1], [], []>} : vector<16x16xf32>, vector<16x128xf32>, vector<16x128xf32> -> vector<16x128xf32>
    %c1 = arith.constant 1 : index
    %19 = memref.load %arg0[%c1] : memref<2xf32, #tpu.memory_space<smem>>
    %cst_13 = arith.constant 1.000000e+00 : f32
    %20 = arith.addf %cst_13, %19 : f32
    %21 = vector.broadcast %20 : f32 to vector<16x128xf32>
    %22 = arith.mulf %21, %17 : vector<16x128xf32>
    %23 = arith.addf %18, %22 : vector<16x128xf32>
    %c0_14 = arith.constant 0 : index
    %c0_15 = arith.constant 0 : index
    %24 = vector.load %arg4[%c0_14, %c0_15] : memref<128x384xf32, #tpu.memory_space<vmem>>, vector<128x128xf32>
    %cst_16 = arith.constant dense<0.000000e+00> : vector<16x128xf32>
    %25 = tpu.matmul %23, %24, %cst_16 {dimension_numbers = #tpu.dot_dimension_numbers<[1], [0], [0], [1], [0, 0, 1, 1], [], []>} : vector<16x128xf32>, vector<128x128xf32>, vector<16x128xf32> -> vector<16x128xf32>
    %c1_17 = arith.constant 1 : index
    %c0_18 = arith.constant 0 : index
    %26 = vector.load %arg7[%c1_17, %c0_18] : memref<8x128xf32, #tpu.memory_space<vmem>>, vector<1x128xf32>
    %27 = vector.broadcast %26 : vector<1x128xf32> to vector<16x128xf32>
    %28 = arith.addf %25, %27 : vector<16x128xf32>
    %cst_19 = arith.constant 0.000000e+00 : f32
    %29 = vector.broadcast %cst_19 : f32 to vector<16x128xf32>
    %30 = arith.cmpf ogt, %28, %29 : vector<16x128xf32>
    %cst_20 = arith.constant 2.000000e-01 : f32
    %31 = vector.broadcast %cst_20 : f32 to vector<16x128xf32>
    %32 = arith.mulf %31, %28 : vector<16x128xf32>
    %33 = arith.select %30, %28, %32 : vector<16x128xi1>, vector<16x128xf32>
    %c0_21 = arith.constant 0 : index
    %c128 = arith.constant 128 : index
    %34 = vector.load %arg4[%c0_21, %c128] : memref<128x384xf32, #tpu.memory_space<vmem>>, vector<128x128xf32>
    %cst_22 = arith.constant dense<0.000000e+00> : vector<16x128xf32>
    %35 = tpu.matmul %33, %34, %cst_22 {dimension_numbers = #tpu.dot_dimension_numbers<[1], [0], [0], [1], [0, 0, 1, 1], [], []>} : vector<16x128xf32>, vector<128x128xf32>, vector<16x128xf32> -> vector<16x128xf32>
    %c2 = arith.constant 2 : index
    %c0_23 = arith.constant 0 : index
    %36 = vector.load %arg7[%c2, %c0_23] : memref<8x128xf32, #tpu.memory_space<vmem>>, vector<1x128xf32>
    %37 = vector.broadcast %36 : vector<1x128xf32> to vector<16x128xf32>
    %38 = arith.addf %35, %37 : vector<16x128xf32>
    %cst_24 = arith.constant 0.000000e+00 : f32
    %39 = vector.broadcast %cst_24 : f32 to vector<16x128xf32>
    %40 = arith.cmpf ogt, %38, %39 : vector<16x128xf32>
    %cst_25 = arith.constant 2.000000e-01 : f32
    %41 = vector.broadcast %cst_25 : f32 to vector<16x128xf32>
    %42 = arith.mulf %41, %38 : vector<16x128xf32>
    %43 = arith.select %40, %38, %42 : vector<16x128xi1>, vector<16x128xf32>
    %c0_26 = arith.constant 0 : index
    %c0_27 = arith.constant 0 : index
    %44 = vector.load %arg8[%c0_26, %c0_27] : memref<16x128xf32, #tpu.memory_space<vmem>>, vector<16x128xf32>
    tpu.vector_store %arg8[%c0_26, %c0_27], %43 {strides = array<i32>} : memref<16x128xf32, #tpu.memory_space<vmem>>, vector<16x128xf32>,
    %c0_28 = arith.constant 0 : index
    %c0_29 = arith.constant 0 : index
    %45 = vector.load %arg5[%c0_28, %c0_29] : memref<8x16xf32, #tpu.memory_space<vmem>>, vector<8x16xf32>
    %cst_30 = arith.constant dense<0.000000e+00> : vector<8x128xf32>
    %46 = tpu.matmul %45, %43, %cst_30 {dimension_numbers = #tpu.dot_dimension_numbers<[1], [0], [0], [1], [0, 0, 1, 1], [], []>} : vector<8x16xf32>, vector<16x128xf32>, vector<8x128xf32> -> vector<8x128xf32>
    %c0_31 = arith.constant 0 : index
    %c256 = arith.constant 256 : index
    %47 = vector.load %arg4[%c0_31, %c256] : memref<128x384xf32, #tpu.memory_space<vmem>>, vector<128x128xf32>
    %cst_32 = arith.constant dense<0.000000e+00> : vector<8x128xf32>
    %48 = tpu.matmul %46, %47, %cst_32 {dimension_numbers = #tpu.dot_dimension_numbers<[1], [0], [0], [1], [0, 0, 1, 1], [], []>} : vector<8x128xf32>, vector<128x128xf32>, vector<8x128xf32> -> vector<8x128xf32>
    %c3 = arith.constant 3 : index
    %c0_33 = arith.constant 0 : index
    %49 = vector.load %arg7[%c3, %c0_33] : memref<8x128xf32, #tpu.memory_space<vmem>>, vector<1x128xf32>
    %50 = vector.broadcast %49 : vector<1x128xf32> to vector<8x128xf32>
    %51 = arith.addf %48, %50 : vector<8x128xf32>
    %cst_34 = arith.constant 0.000000e+00 : f32
    %52 = vector.broadcast %cst_34 : f32 to vector<8x128xf32>
    %53 = arith.maximumf %51, %52 : vector<8x128xf32>
    %c0_35 = arith.constant 0 : index
    %c0_36 = arith.constant 0 : index
    %54 = vector.load %arg6[%c0_35, %c0_36] : memref<128x128xf32, #tpu.memory_space<vmem>>, vector<128x128xf32>
    %cst_37 = arith.constant dense<0.000000e+00> : vector<8x128xf32>
    %55 = tpu.matmul %53, %54, %cst_37 {dimension_numbers = #tpu.dot_dimension_numbers<[1], [0], [0], [1], [0, 0, 1, 1], [], []>} : vector<8x128xf32>, vector<128x128xf32>, vector<8x128xf32> -> vector<8x128xf32>
    %c4 = arith.constant 4 : index
    %c0_38 = arith.constant 0 : index
    %56 = vector.load %arg7[%c4, %c0_38] : memref<8x128xf32, #tpu.memory_space<vmem>>, vector<1x128xf32>
    %57 = vector.broadcast %56 : vector<1x128xf32> to vector<8x128xf32>
    %58 = arith.addf %55, %57 : vector<8x128xf32>
    %c0_39 = arith.constant 0 : index
    %c0_40 = arith.constant 0 : index
    %59 = vector.load %arg9[%c0_39, %c0_40] : memref<8x128xf32, #tpu.memory_space<vmem>>, vector<8x128xf32>
    tpu.vector_store %arg9[%c0_39, %c0_40], %58 {strides = array<i32>} : memref<8x128xf32, #tpu.memory_space<vmem>>, vector<8x128xf32>,
    return
  }
}

</mosaic_0001>

<llo_original>
// kernel: tpu_custom_call.1
$region0: #{tpu_custom_call.1}
  #allocation0 [shape = 'u32[]', space=smem, size = 0x4, offset = 0x4, fixed_abs, tag = 'smem constant byte address 0x4 - core index']
  #allocation1 [shape = 'u32[144,128]{1,0:T(1,128)}', space=vmem, size = 0x12000, scoped, tag = 'internal scratch']
  %s0 = inlined_call_operand.vmem [shape: f32[2], index: 0, kind: input, shape index: {}]
  %s1 = inlined_call_operand.vmem [shape: f32[16,16], index: 1, kind: input, shape index: {}]
  %s2 = inlined_call_operand.vmem [shape: f32[16,8], index: 2, kind: input, shape index: {}]
  %s3 = inlined_call_operand.vmem [shape: f32[8,128], index: 3, kind: input, shape index: {}]
  %s4 = inlined_call_operand.hbm [shape: f32[128,384], index: 4, kind: input, shape index: {}]
  %s5 = inlined_call_operand.vmem [shape: f32[8,16], index: 5, kind: input, shape index: {}]
  %s6 = inlined_call_operand.hbm [shape: f32[128,128], index: 6, kind: input, shape index: {}]
  %s7 = inlined_call_operand.vmem [shape: f32[8,128], index: 7, kind: input, shape index: {}]
  %s8 = inlined_call_operand.hbm [shape: f32[16,128], index: 8, kind: output, shape index: {0}]
  %s9 = inlined_call_operand.hbm [shape: f32[8,128], index: 9, kind: output, shape index: {1}]
  %10 = xla_tuple %s8, %s9
  %s11 = sld [smem:[#allocation0]]
  $region62: #{tpu_custom_call.1} parent=0
    _
  %s13 = ssub.s32 1, %s11
  %s14 = scalar_select 0, %s13, %s11
  $region1: #{tpu_custom_call.1} parent=0
    #allocation2 [shape = 'u8[512]{0}', space=smem, size = 0x200, scoped, tag = 'input window, operand 0, single buffered']
    #allocation3 [shape = 's32[1]{0}', space=sflag, size = 0x4, scoped, tag = 'scoped memory for tpu_custom_call.1']
    #allocation4 [shape = 's32[1]{0}', space=sflag, size = 0x4, scoped, tag = 'scoped memory for tpu_custom_call.1']
    #allocation5 [shape = 's32[1]{0}', space=sflag, size = 0x4, scoped, tag = 'scoped memory for tpu_custom_call.1']
    #allocation6 [shape = 'u8[196608]{0}', space=vmem, size = 0x30000, scoped, tag = 'input window, operand 4, single buffered']
    #allocation7 [shape = 'u8[65536]{0}', space=vmem, size = 0x10000, scoped, tag = 'input window, operand 6, single buffered']
    #allocation8 [shape = 's32[1]{0}', space=sflag, size = 0x4, scoped, tag = 'scoped memory for tpu_custom_call.1']
    #allocation9 [shape = 'u8[8192]{0}', space=vmem, size = 0x2000, scoped, tag = 'output window, operand 0, single buffered']
    #allocation10 [shape = 'u8[4096]{0}', space=vmem, size = 0x1000, scoped, tag = 'output window, operand 1, single buffered']
    #allocation11 [shape = 's32[1]{0}', space=sflag, size = 0x4, scoped, tag = 'scoped memory for tpu_custom_call.1']
    %15 = vsyncpa [#allocation5], 0
    %16 = vsyncpa [#allocation3], 0
    %17 = vsyncpa [#allocation8], 0
    %18 = vsyncpa [#allocation4], 0
    %19 = vsyncpa [#allocation11], 0
    // Predicated region
    $region2: #{tpu_custom_call.1} parent=1 // pred_check
      _
    $region3: #{tpu_custom_call.1} parent=1 // pred_check_branch
      %21 = sbr.rel (0) target = $region5
    $region4: #{tpu_custom_call.1} parent=1 // pred_region
      %s23 = ssub.s32 16, 16
      %24 = vsyncadd [#allocation5], %s23
      %s26 = sshll.u32 %s0, 4
      %s27 = int_to_ptr.vmem [resolvable:$true] %s26
      %29 = dma.vmem_to_smem %s27, 16, [#allocation2], [#allocation5]
    $region5: #{tpu_custom_call.1} parent=1 // pred_fallthru
      _
    // Predicated region
    $region6: #{tpu_custom_call.1} parent=1 // pred_check
      _
    $region7: #{tpu_custom_call.1} parent=1 // pred_check_branch
      %31 = sbr.rel (0) target = $region9
    $region8: #{tpu_custom_call.1} parent=1 // pred_region
      _
    $region9: #{tpu_custom_call.1} parent=1 // pred_fallthru
      _
    // Predicated region
    $region10: #{tpu_custom_call.1} parent=1 // pred_check
      _
    $region11: #{tpu_custom_call.1} parent=1 // pred_check_branch
      %33 = sbr.rel (0) target = $region13
    $region12: #{tpu_custom_call.1} parent=1 // pred_region
      _
    $region13: #{tpu_custom_call.1} parent=1 // pred_fallthru
      _
    // Predicated region
    $region14: #{tpu_custom_call.1} parent=1 // pred_check
      _
    $region15: #{tpu_custom_call.1} parent=1 // pred_check_branch
      %35 = sbr.rel (0) target = $region17
    $region16: #{tpu_custom_call.1} parent=1 // pred_region
      _
    $region17: #{tpu_custom_call.1} parent=1 // pred_fallthru
      _
    // Predicated region
    $region18: #{tpu_custom_call.1} parent=1 // pred_check
      _
    $region19: #{tpu_custom_call.1} parent=1 // pred_check_branch
      %37 = sbr.rel (0) target = $region21
    $region20: #{tpu_custom_call.1} parent=1 // pred_region
      %s39 = ssub.s32 6144, 6144
      %40 = vsyncadd [#allocation3], %s39
      %s41 = sshll.u32 [#allocation6], 4
      %s42 = int_to_ptr.vmem [resolvable:$true] %s41
      %47 = dma.hbm_to_vmem [thread:$0]  %s4, 6144, %s42, [#allocation3], 384, 384, 24
    $region21: #{tpu_custom_call.1} parent=1 // pred_fallthru
      _
    // Predicated region
    $region22: #{tpu_custom_call.1} parent=1 // pred_check
      _
    $region23: #{tpu_custom_call.1} parent=1 // pred_check_branch
      %49 = sbr.rel (0) target = $region25
    $region24: #{tpu_custom_call.1} parent=1 // pred_region
      _
    $region25: #{tpu_custom_call.1} parent=1 // pred_fallthru
      _
    // Predicated region
    $region26: #{tpu_custom_call.1} parent=1 // pred_check
      _
    $region27: #{tpu_custom_call.1} parent=1 // pred_check_branch
      %51 = sbr.rel (0) target = $region29
    $region28: #{tpu_custom_call.1} parent=1 // pred_region
      %s53 = ssub.s32 2048, 2048
      %54 = vsyncadd [#allocation8], %s53
      %s55 = sshll.u32 [#allocation7], 4
      %s56 = int_to_ptr.vmem [resolvable:$true] %s55
      %61 = dma.hbm_to_vmem [thread:$0]  %s6, 2048, %s56, [#allocation8], 128, 128, 8
    $region29: #{tpu_custom_call.1} parent=1 // pred_fallthru
      _
    // Predicated region
    $region30: #{tpu_custom_call.1} parent=1 // pred_check
      _
    $region31: #{tpu_custom_call.1} parent=1 // pred_check_branch
      %63 = sbr.rel (0) target = $region33
    $region32: #{tpu_custom_call.1} parent=1 // pred_region
      _
    $region33: #{tpu_custom_call.1} parent=1 // pred_fallthru
      _
    // Predicated region
    $region34: #{tpu_custom_call.1} parent=1 // pred_check
      _
    $region35: #{tpu_custom_call.1} parent=1 // pred_check_branch
      %65 = sbr.rel (0) target = $region37
    $region36: #{tpu_custom_call.1} parent=1 // pred_region
      %66 = dma.done [#allocation5], 16
    $region37: #{tpu_custom_call.1} parent=1 // pred_fallthru
      _
    // Predicated region
    $region38: #{tpu_custom_call.1} parent=1 // pred_check
      _
    $region39: #{tpu_custom_call.1} parent=1 // pred_check_branch
      %68 = sbr.rel (0) target = $region41
    $region40: #{tpu_custom_call.1} parent=1 // pred_region
      %69 = dma.done [#allocation3], 6144
    $region41: #{tpu_custom_call.1} parent=1 // pred_fallthru
      _
    // Predicated region
    $region42: #{tpu_custom_call.1} parent=1 // pred_check
      _
    $region43: #{tpu_custom_call.1} parent=1 // pred_check_branch
      %71 = sbr.rel (0) target = $region45
    $region44: #{tpu_custom_call.1} parent=1 // pred_region
      %72 = dma.done [#allocation8], 2048
    $region45: #{tpu_custom_call.1} parent=1 // pred_fallthru
      _
    %73 = sfence
    %v74 = vld [vmem:[%s1] sm:$0xff]
    %v75 = vld [vmem:[%s1 + $0x8] sm:$0xff]
    %v76 = vld [vmem:[%s2] sm:$0xff]
    %v77 = vld [vmem:[%s2 + $0x8] sm:$0xff]
    %s78 = sld [smem:[#allocation2]]
    %s79 = sadd.f32 %s78, 1.0
    %v80 = vstv %s79
    %v81 = vmul.f32 %v80, %v76
    %v82 = vmul.f32 %v80, %v77
    %vm83 = vcmask 130048
    %v85 = vsel %vm83, %v74, 0
    %v88 = vsel %vm83, %v75, 0
    %90 = vmatprep.subr.mxu0 0.0
    %91 = vmatpush1.msra.mxu0 %v76
    %92 = vmatprep.subr.mxu0 0.0
    %93 = vmatpush1.msra.mxu0 %v77
    %94 = vmatprep.subr.mxu0 0.0
    %95 = vmatpush1.msra.mxu0 0.0
    %96 = vmatprep.subr.mxu0 0.0
    %97 = vmatpush1.msra.mxu0 0.0
    %98 = vmatprep.subr.mxu0 0.0
    %99 = vmatpush1.msra.mxu0 0.0
    %100 = vmatprep.subr.mxu0 0.0
    %101 = vmatpush1.msra.mxu0 0.0
    %102 = vmatprep.subr.mxu0 0.0
    %103 = vmatpush1.msra.mxu0 0.0
    %104 = vmatprep.subr.mxu0 0.0
    %105 = vmatpush1.msra.mxu0 0.0
    %106 = vmatprep.subr.mxu0 0.0
    %107 = vmatpush1.msra.mxu0 0.0
    %108 = vmatprep.subr.mxu0 0.0
    %109 = vmatpush1.msra.mxu0 0.0
    %110 = vmatprep.subr.mxu0 0.0
    %111 = vmatpush1.msra.mxu0 0.0
    %112 = vmatprep.subr.mxu0 0.0
    %113 = vmatpush1.msra.mxu0 0.0
    %114 = vmatprep.subr.mxu0 0.0
    %115 = vmatpush1.msra.mxu0 0.0
    %116 = vmatprep.subr.mxu0 0.0
    %117 = vmatpush1.msra.mxu0 0.0
    %118 = vmatprep.subr.mxu0 0.0
    %119 = vmatpush1.msra.mxu0 0.0
    %120 = vmatprep.subr.mxu0 0.0
    %121 = vmatpush1.msra.mxu0 0.0
    %122 = vmatprep.subr.mxu0 0.0
    %123 = vmatpush1.msra.mxu0 0.0
    %124 = vmatprep.subr.mxu0 0.0
    %125 = vmatpush1.msra.mxu0 0.0
    %126 = vmatprep.subr.mxu0 0.0
    %127 = vmatpush1.msra.mxu0 0.0
    %128 = vmatprep.subr.mxu0 0.0
    %129 = vmatpush1.msra.mxu0 0.0
    %130 = vmatprep.subr.mxu0 0.0
    %131 = vmatpush1.msra.mxu0 0.0
    %132 = vmatprep.subr.mxu0 0.0
    %133 = vmatpush1.msra.mxu0 0.0
    %134 = vmatprep.subr.mxu0 0.0
    %135 = vmatpush1.msra.mxu0 0.0
    %136 = vmatprep.subr.mxu0 0.0
    %137 = vmatpush1.msra.mxu0 0.0
    %138 = vmatprep.subr.mxu0 0.0
    %139 = vmatpush1.msra.mxu0 0.0
    %140 = vmatprep.subr.mxu0 0.0
    %141 = vmatpush1.msra.mxu0 0.0
    %142 = vmatprep.subr.mxu0 0.0
    %143 = vmatpush1.msra.mxu0 0.0
    %144 = vmatprep.subr.mxu0 0.0
    %145 = vmatpush1.msra.mxu0 0.0
    %146 = vmatprep.subr.mxu0 0.0
    %147 = vmatpush1.msra.mxu0 0.0
    %148 = vmatprep.subr.mxu0 0.0
    %149 = vmatpush1.msra.mxu0 0.0
    %150 = vmatprep.subr.mxu0 0.0
    %151 = vmatpush1.msra.mxu0 0.0
    %152 = vmatprep.subr.mxu0 0.0
    %153 = vmatpush1.msra.mxu0 0.0
    %154 = vmatprep.mubr.f32.mxu0 0.0
    %155 = vmatmul.mubr.f32.gmra.mrb[0].mxu0 %v85
    %v156 = vpop.f32.mrb[0].mxu0
    %v157 = vadd.f32 %v81, %v156
    %v158 = vpop.f32.mrb[0].mxu0
    %159 = vmatprep.mubr.f32.mxu0 0.0
    %160 = vmatmul.mubr.f32.gmra.mrb[0].mxu0 %v88
    %v161 = vpop.f32.mrb[0].mxu0
    %v162 = vadd.f32 %v82, %v161
    %v163 = vpop.f32.mrb[0].mxu0
    %164 = vdwg.mxu0
    %v165 = vld [vmem:[%s3] sm:$0xff]
    %v166 = vld [vmem:[%s7] sm:$0x1]
    %v167 = vlaneseq
    %v168 = vshrl.u32 %v167, 7
    %v169 = vsub.s32 0, %v168
    %v170 = vrot.slane %v166, %v169
    %vm171 = vcmask 64512
    %v173 = vsel %vm171, %v157, 0
    %v176 = vsel %vm171, %v162, 0
    %178 = vmatprep.subr.mxu0 0.0
    %179 = vmatpush1.msra.mxu0 %v165
    %180 = vmatprep.subr.mxu0 0.0
    %181 = vmatpush1.msra.mxu0 0.0
    %182 = vmatprep.subr.mxu0 0.0
    %183 = vmatpush1.msra.mxu0 0.0
    %184 = vmatprep.subr.mxu0 0.0
    %185 = vmatpush1.msra.mxu0 0.0
    %186 = vmatprep.subr.mxu0 0.0
    %187 = vmatpush1.msra.mxu0 0.0
    %188 = vmatprep.subr.mxu0 0.0
    %189 = vmatpush1.msra.mxu0 0.0
    %190 = vmatprep.subr.mxu0 0.0
    %191 = vmatpush1.msra.mxu0 0.0
    %192 = vmatprep.subr.mxu0 0.0
    %193 = vmatpush1.msra.mxu0 0.0
    %194 = vmatprep.subr.mxu0 0.0
    %195 = vmatpush1.msra.mxu0 0.0
    %196 = vmatprep.subr.mxu0 0.0
    %197 = vmatpush1.msra.mxu0 0.0
    %198 = vmatprep.subr.mxu0 0.0
    %199 = vmatpush1.msra.mxu0 0.0
    %200 = vmatprep.subr.mxu0 0.0
    %201 = vmatpush1.msra.mxu0 0.0
    %202 = vmatprep.subr.mxu0 0.0
    %203 = vmatpush1.msra.mxu0 0.0
    %204 = vmatprep.subr.mxu0 0.0
    %205 = vmatpush1.msra.mxu0 0.0
    %206 = vmatprep.subr.mxu0 0.0
    %207 = vmatpush1.msra.mxu0 0.0
    %208 = vmatprep.subr.mxu0 0.0
    %209 = vmatpush1.msra.mxu0 0.0
    %210 = vmatprep.subr.mxu0 0.0
    %211 = vmatpush1.msra.mxu0 0.0
    %212 = vmatprep.subr.mxu0 0.0
    %213 = vmatpush1.msra.mxu0 0.0
    %214 = vmatprep.subr.mxu0 0.0
    %215 = vmatpush1.msra.mxu0 0.0
    %216 = vmatprep.subr.mxu0 0.0
    %217 = vmatpush1.msra.mxu0 0.0
    %218 = vmatprep.subr.mxu0 0.0
    %219 = vmatpush1.msra.mxu0 0.0
    %220 = vmatprep.subr.mxu0 0.0
    %221 = vmatpush1.msra.mxu0 0.0
    %222 = vmatprep.subr.mxu0 0.0
    %223 = vmatpush1.msra.mxu0 0.0
    %224 = vmatprep.subr.mxu0 0.0
    %225 = vmatpush1.msra.mxu0 0.0
    %226 = vmatprep.subr.mxu0 0.0
    %227 = vmatpush1.msra.mxu0 0.0
    %228 = vmatprep.subr.mxu0 0.0
    %229 = vmatpush1.msra.mxu0 0.0
    %230 = vmatprep.subr.mxu0 0.0
    %231 = vmatpush1.msra.mxu0 0.0
    %232 = vmatprep.subr.mxu0 0.0
    %233 = vmatpush1.msra.mxu0 0.0
    %234 = vmatprep.subr.mxu0 0.0
    %235 = vmatpush1.msra.mxu0 0.0
    %236 = vmatprep.subr.mxu0 0.0
    %237 = vmatpush1.msra.mxu0 0.0
    %238 = vmatprep.subr.mxu0 0.0
    %239 = vmatpush1.msra.mxu0 0.0
    %240 = vmatprep.subr.mxu0 0.0
    %241 = vmatpush1.msra.mxu0 0.0
    %242 = vmatprep.mubr.f32.mxu0 0.0
    %243 = vmatmul.mubr.f32.gmra.mrb[0].mxu0 %v173
    %v244 = vpop.f32.mrb[0].mxu0
    %v245 = vadd.f32 %v170, %v244
    %v246 = vpop.f32.mrb[0].mxu0
    %247 = vmatprep.mubr.f32.mxu0 0.0
    %248 = vmatmul.mubr.f32.gmra.mrb[0].mxu0 %v176
    %v249 = vpop.f32.mrb[0].mxu0
    %v250 = vadd.f32 %v170, %v249
    %v251 = vpop.f32.mrb[0].mxu0
    %252 = vdwg.mxu0
    %vm253 = vcmp.gt.f32.partialorder %v245, 0.0
    %vm254 = vcmp.gt.f32.partialorder %v250, 0.0
    %v255 = vmul.f32 %v245, 0.2
    %v256 = vmul.f32 %v250, 0.2
    %v257 = vsel %vm253, %v245, %v255
    %v258 = vsel %vm254, %v250, %v256
    %s259 = sld [smem:[#allocation2 + $0x1]]
    %s260 = sadd.f32 %s259, 1.0
    %v261 = vstv %s260
    %v262 = vmul.f32 %v261, %v257
    %v263 = vmul.f32 %v261, %v258
    %264 = vmatprep.subr.mxu0 0.0
    %265 = vmatpush1.msra.mxu0 %v257
    %266 = vmatprep.subr.mxu0 0.0
    %267 = vmatpush1.msra.mxu0 %v258
    %268 = vmatprep.subr.mxu0 0.0
    %269 = vmatpush1.msra.mxu0 0.0
    %270 = vmatprep.subr.mxu0 0.0
    %271 = vmatpush1.msra.mxu0 0.0
    %272 = vmatprep.subr.mxu0 0.0
    %273 = vmatpush1.msra.mxu0 0.0
    %274 = vmatprep.subr.mxu0 0.0
    %275 = vmatpush1.msra.mxu0 0.0
    %276 = vmatprep.subr.mxu0 0.0
    %277 = vmatpush1.msra.mxu0 0.0
    %278 = vmatprep.subr.mxu0 0.0
    %279 = vmatpush1.msra.mxu0 0.0
    %280 = vmatprep.subr.mxu0 0.0
    %281 = vmatpush1.msra.mxu0 0.0
    %282 = vmatprep.subr.mxu0 0.0
    %283 = vmatpush1.msra.mxu0 0.0
    %284 = vmatprep.subr.mxu0 0.0
    %285 = vmatpush1.msra.mxu0 0.0
    %286 = vmatprep.subr.mxu0 0.0
    %287 = vmatpush1.msra.mxu0 0.0
    %288 = vmatprep.subr.mxu0 0.0
    %289 = vmatpush1.msra.mxu0 0.0
    %290 = vmatprep.subr.mxu0 0.0
    %291 = vmatpush1.msra.mxu0 0.0
    %292 = vmatprep.subr.mxu0 0.0
    %293 = vmatpush1.msra.mxu0 0.0
    %294 = vmatprep.subr.mxu0 0.0
    %295 = vmatpush1.msra.mxu0 0.0
    %296 = vmatprep.subr.mxu0 0.0
    %297 = vmatpush1.msra.mxu0 0.0
    %298 = vmatprep.subr.mxu0 0.0
    %299 = vmatpush1.msra.mxu0 0.0
    %300 = vmatprep.subr.mxu0 0.0
    %301 = vmatpush1.msra.mxu0 0.0
    %302 = vmatprep.subr.mxu0 0.0
    %303 = vmatpush1.msra.mxu0 0.0
    %304 = vmatprep.subr.mxu0 0.0
    %305 = vmatpush1.msra.mxu0 0.0
    %306 = vmatprep.subr.mxu0 0.0
    %307 = vmatpush1.msra.mxu0 0.0
    %308 = vmatprep.subr.mxu0 0.0
    %309 = vmatpush1.msra.mxu0 0.0
    %310 = vmatprep.subr.mxu0 0.0
    %311 = vmatpush1.msra.mxu0 0.0
    %312 = vmatprep.subr.mxu0 0.0
    %313 = vmatpush1.msra.mxu0 0.0
    %314 = vmatprep.subr.mxu0 0.0
    %315 = vmatpush1.msra.mxu0 0.0
    %316 = vmatprep.subr.mxu0 0.0
    %317 = vmatpush1.msra.mxu0 0.0
    %318 = vmatprep.subr.mxu0 0.0
    %319 = vmatpush1.msra.mxu0 0.0
    %320 = vmatprep.subr.mxu0 0.0
    %321 = vmatpush1.msra.mxu0 0.0
    %322 = vmatprep.subr.mxu0 0.0
    %323 = vmatpush1.msra.mxu0 0.0
    %324 = vmatprep.subr.mxu0 0.0
    %325 = vmatpush1.msra.mxu0 0.0
    %326 = vmatprep.subr.mxu0 0.0
    %327 = vmatpush1.msra.mxu0 0.0
    %328 = vmatprep.mubr.f32.mxu0 0.0
    %329 = vmatmul.mubr.f32.gmra.mrb[0].mxu0 %v85
    %v330 = vpop.f32.mrb[0].mxu0
    %v331 = vadd.f32 %v262, %v330
    %v332 = vpop.f32.mrb[0].mxu0
    %333 = vmatprep.mubr.f32.mxu0 0.0
    %334 = vmatmul.mubr.f32.gmra.mrb[0].mxu0 %v88
    %v335 = vpop.f32.mrb[0].mxu0
    %v336 = vadd.f32 %v263, %v335
    %v337 = vpop.f32.mrb[0].mxu0
    %338 = vdwg.mxu0
    %v339 = vld [vmem:[#allocation6] sm:$0xff]
    %v340 = vld [vmem:[#allocation6 + $0x18] sm:$0xff]
    %v341 = vld [vmem:[#allocation6 + $0x30] sm:$0xff]
    %v342 = vld [vmem:[#allocation6 + $0x48] sm:$0xff]
    %v343 = vld [vmem:[#allocation6 + $0x60] sm:$0xff]
    %v344 = vld [vmem:[#allocation6 + $0x78] sm:$0xff]
    %v345 = vld [vmem:[#allocation6 + $0x90] sm:$0xff]
    %v346 = vld [vmem:[#allocation6 + $0xa8] sm:$0xff]
    %v347 = vld [vmem:[#allocation6 + $0xc0] sm:$0xff]
    %v348 = vld [vmem:[#allocation6 + $0xd8] sm:$0xff]
    %v349 = vld [vmem:[#allocation6 + $0xf0] sm:$0xff]
    %v350 = vld [vmem:[#allocation6 + $0x108] sm:$0xff]
    %v351 = vld [vmem:[#allocation6 + $0x120] sm:$0xff]
    %v352 = vld [vmem:[#allocation6 + $0x138] sm:$0xff]
    %v353 = vld [vmem:[#allocation6 + $0x150] sm:$0xff]
    %v354 = vld [vmem:[#allocation6 + $0x168] sm:$0xff]
    %v355 = vld [vmem:[%s7 + $0x1] sm:$0x1]
    %v356 = vlaneseq
    %v357 = vshrl.u32 %v356, 7
    %v358 = vsub.s32 0, %v357
    %v359 = vrot.slane %v355, %v358
    %360 = vmatprep.subr.mxu0 0.0
    %361 = vmatpush1.msra.mxu0 %v339
    %362 = vmatprep.subr.mxu0 0.0
    %363 = vmatpush1.msra.mxu0 %v340
    %364 = vmatprep.subr.mxu0 0.0
    %365 = vmatpush1.msra.mxu0 %v341
    %366 = vmatprep.subr.mxu0 0.0
    %367 = vmatpush1.msra.mxu0 %v342
    %368 = vmatprep.subr.mxu0 0.0
    %369 = vmatpush1.msra.mxu0 %v343
    %370 = vmatprep.subr.mxu0 0.0
    %371 = vmatpush1.msra.mxu0 %v344
    %372 = vmatprep.subr.mxu0 0.0
    %373 = vmatpush1.msra.mxu0 %v345
    %374 = vmatprep.subr.mxu0 0.0
    %375 = vmatpush1.msra.mxu0 %v346
    %376 = vmatprep.subr.mxu0 0.0
    %377 = vmatpush1.msra.mxu0 %v347
    %378 = vmatprep.subr.mxu0 0.0
    %379 = vmatpush1.msra.mxu0 %v348
    %380 = vmatprep.subr.mxu0 0.0
    %381 = vmatpush1.msra.mxu0 %v349
    %382 = vmatprep.subr.mxu0 0.0
    %383 = vmatpush1.msra.mxu0 %v350
    %384 = vmatprep.subr.mxu0 0.0
    %385 = vmatpush1.msra.mxu0 %v351
    %386 = vmatprep.subr.mxu0 0.0
    %387 = vmatpush1.msra.mxu0 %v352
    %388 = vmatprep.subr.mxu0 0.0
    %389 = vmatpush1.msra.mxu0 %v353
    %390 = vmatprep.subr.mxu0 0.0
    %391 = vmatpush1.msra.mxu0 %v354
    %392 = vmatprep.subr.mxu0 0.0
    %393 = vmatpush1.msra.mxu0 0.0
    %394 = vmatprep.subr.mxu0 0.0
    %395 = vmatpush1.msra.mxu0 0.0
    %396 = vmatprep.subr.mxu0 0.0
    %397 = vmatpush1.msra.mxu0 0.0
    %398 = vmatprep.subr.mxu0 0.0
    %399 = vmatpush1.msra.mxu0 0.0
    %400 = vmatprep.subr.mxu0 0.0
    %401 = vmatpush1.msra.mxu0 0.0
    %402 = vmatprep.subr.mxu0 0.0
    %403 = vmatpush1.msra.mxu0 0.0
    %404 = vmatprep.subr.mxu0 0.0
    %405 = vmatpush1.msra.mxu0 0.0
    %406 = vmatprep.subr.mxu0 0.0
    %407 = vmatpush1.msra.mxu0 0.0
    %408 = vmatprep.subr.mxu0 0.0
    %409 = vmatpush1.msra.mxu0 0.0
    %410 = vmatprep.subr.mxu0 0.0
    %411 = vmatpush1.msra.mxu0 0.0
    %412 = vmatprep.subr.mxu0 0.0
    %413 = vmatpush1.msra.mxu0 0.0
    %414 = vmatprep.subr.mxu0 0.0
    %415 = vmatpush1.msra.mxu0 0.0
    %416 = vmatprep.subr.mxu0 0.0
    %417 = vmatpush1.msra.mxu0 0.0
    %418 = vmatprep.subr.mxu0 0.0
    %419 = vmatpush1.msra.mxu0 0.0
    %420 = vmatprep.subr.mxu0 0.0
    %421 = vmatpush1.msra.mxu0 0.0
    %422 = vmatprep.subr.mxu0 0.0
    %423 = vmatpush1.msra.mxu0 0.0
    %424 = vmatprep.mubr.f32.mxu0 0.0
    %425 = vmatmul.mubr.f32.gmra.mrb[0].mxu0 %v331
    %v426 = vpop.f32.mrb[0].mxu0
    %v427 = vadd.f32 %v359, %v426
    %v428 = vpop.f32.mrb[0].mxu0
    %429 = vmatprep.mubr.f32.mxu0 0.0
    %430 = vmatmul.mubr.f32.gmra.mrb[0].mxu0 %v336
    %v431 = vpop.f32.mrb[0].mxu0
    %v432 = vadd.f32 %v359, %v431
    %v433 = vpop.f32.mrb[0].mxu0
    %434 = vdwg.mxu0
    %vm435 = vcmp.gt.f32.partialorder %v427, 0.0
    %vm436 = vcmp.gt.f32.partialorder %v432, 0.0
    %v437 = vmul.f32 %v427, 0.2
    %v438 = vmul.f32 %v432, 0.2
    %v439 = vsel %vm435, %v427, %v437
    %v440 = vsel %vm436, %v432, %v438
    %v441 = vld [vmem:[#allocation6 + $0x8] sm:$0xff]
    %v442 = vld [vmem:[#allocation6 + $0x20] sm:$0xff]
    %v443 = vld [vmem:[#allocation6 + $0x38] sm:$0xff]
    %v444 = vld [vmem:[#allocation6 + $0x50] sm:$0xff]
    %v445 = vld [vmem:[#allocation6 + $0x68] sm:$0xff]
    %v446 = vld [vmem:[#allocation6 + $0x80] sm:$0xff]
    %v447 = vld [vmem:[#allocation6 + $0x98] sm:$0xff]
    %v448 = vld [vmem:[#allocation6 + $0xb0] sm:$0xff]
    %v449 = vld [vmem:[#allocation6 + $0xc8] sm:$0xff]
    %v450 = vld [vmem:[#allocation6 + $0xe0] sm:$0xff]
    %v451 = vld [vmem:[#allocation6 + $0xf8] sm:$0xff]
    %v452 = vld [vmem:[#allocation6 + $0x110] sm:$0xff]
    %v453 = vld [vmem:[#allocation6 + $0x128] sm:$0xff]
    %v454 = vld [vmem:[#allocation6 + $0x140] sm:$0xff]
    %v455 = vld [vmem:[#allocation6 + $0x158] sm:$0xff]
    %v456 = vld [vmem:[#allocation6 + $0x170] sm:$0xff]
    %v457 = vld [vmem:[%s7 + $0x2] sm:$0x1]
    %v458 = vlaneseq
    %v459 = vshrl.u32 %v458, 7
    %v460 = vsub.s32 0, %v459
    %v461 = vrot.slane %v457, %v460
    %462 = vmatprep.subr.mxu0 0.0
    %463 = vmatpush1.msra.mxu0 %v441
    %464 = vmatprep.subr.mxu0 0.0
    %465 = vmatpush1.msra.mxu0 %v442
    %466 = vmatprep.subr.mxu0 0.0
    %467 = vmatpush1.msra.mxu0 %v443
    %468 = vmatprep.subr.mxu0 0.0
    %469 = vmatpush1.msra.mxu0 %v444
    %470 = vmatprep.subr.mxu0 0.0
    %471 = vmatpush1.msra.mxu0 %v445
    %472 = vmatprep.subr.mxu0 0.0
    %473 = vmatpush1.msra.mxu0 %v446
    %474 = vmatprep.subr.mxu0 0.0
    %475 = vmatpush1.msra.mxu0 %v447
    %476 = vmatprep.subr.mxu0 0.0
    %477 = vmatpush1.msra.mxu0 %v448
    %478 = vmatprep.subr.mxu0 0.0
    %479 = vmatpush1.msra.mxu0 %v449
    %480 = vmatprep.subr.mxu0 0.0
    %481 = vmatpush1.msra.mxu0 %v450
    %482 = vmatprep.subr.mxu0 0.0
    %483 = vmatpush1.msra.mxu0 %v451
    %484 = vmatprep.subr.mxu0 0.0
    %485 = vmatpush1.msra.mxu0 %v452
    %486 = vmatprep.subr.mxu0 0.0
    %487 = vmatpush1.msra.mxu0 %v453
    %488 = vmatprep.subr.mxu0 0.0
    %489 = vmatpush1.msra.mxu0 %v454
    %490 = vmatprep.subr.mxu0 0.0
    %491 = vmatpush1.msra.mxu0 %v455
    %492 = vmatprep.subr.mxu0 0.0
    %493 = vmatpush1.msra.mxu0 %v456
    %494 = vmatprep.subr.mxu0 0.0
    %495 = vmatpush1.msra.mxu0 0.0
    %496 = vmatprep.subr.mxu0 0.0
    %497 = vmatpush1.msra.mxu0 0.0
    %498 = vmatprep.subr.mxu0 0.0
    %499 = vmatpush1.msra.mxu0 0.0
    %500 = vmatprep.subr.mxu0 0.0
    %501 = vmatpush1.msra.mxu0 0.0
    %502 = vmatprep.subr.mxu0 0.0
    %503 = vmatpush1.msra.mxu0 0.0
    %504 = vmatprep.subr.mxu0 0.0
    %505 = vmatpush1.msra.mxu0 0.0
    %506 = vmatprep.subr.mxu0 0.0
    %507 = vmatpush1.msra.mxu0 0.0
    %508 = vmatprep.subr.mxu0 0.0
    %509 = vmatpush1.msra.mxu0 0.0
    %510 = vmatprep.subr.mxu0 0.0
    %511 = vmatpush1.msra.mxu0 0.0
    %512 = vmatprep.subr.mxu0 0.0
    %513 = vmatpush1.msra.mxu0 0.0
    %514 = vmatprep.subr.mxu0 0.0
    %515 = vmatpush1.msra.mxu0 0.0
    %516 = vmatprep.subr.mxu0 0.0
    %517 = vmatpush1.msra.mxu0 0.0
    %518 = vmatprep.subr.mxu0 0.0
    %519 = vmatpush1.msra.mxu0 0.0
    %520 = vmatprep.subr.mxu0 0.0
    %521 = vmatpush1.msra.mxu0 0.0
    %522 = vmatprep.subr.mxu0 0.0
    %523 = vmatpush1.msra.mxu0 0.0
    %524 = vmatprep.subr.mxu0 0.0
    %525 = vmatpush1.msra.mxu0 0.0
    %526 = vmatprep.mubr.f32.mxu0 0.0
    %527 = vmatmul.mubr.f32.gmra.mrb[0].mxu0 %v439
    %v528 = vpop.f32.mrb[0].mxu0
    %v529 = vadd.f32 %v461, %v528
    %v530 = vpop.f32.mrb[0].mxu0
    %531 = vmatprep.mubr.f32.mxu0 0.0
    %532 = vmatmul.mubr.f32.gmra.mrb[0].mxu0 %v440
    %v533 = vpop.f32.mrb[0].mxu0
    %v534 = vadd.f32 %v461, %v533
    %v535 = vpop.f32.mrb[0].mxu0
    %536 = vdwg.mxu0
    %vm537 = vcmp.gt.f32.partialorder %v529, 0.0
    %vm538 = vcmp.gt.f32.partialorder %v534, 0.0
    %v539 = vmul.f32 %v529, 0.2
    %v540 = vmul.f32 %v534, 0.2
    %v541 = vsel %vm537, %v529, %v539
    %v542 = vsel %vm538, %v534, %v540
    %543 = vst [vmem:[#allocation9] sm:$0xff] %v541
    %544 = vst [vmem:[#allocation9 + $0x8] sm:$0xff] %v542
    %v545 = vld [vmem:[%s5] sm:$0xff]
    %v547 = vsel %vm83, %v545, 0
    %549 = vmatprep.subr.mxu0 0.0
    %550 = vmatpush1.msra.mxu0 %v541
    %551 = vmatprep.subr.mxu0 0.0
    %552 = vmatpush1.msra.mxu0 %v542
    %553 = vmatprep.subr.mxu0 0.0
    %554 = vmatpush1.msra.mxu0 0.0
    %555 = vmatprep.subr.mxu0 0.0
    %556 = vmatpush1.msra.mxu0 0.0
    %557 = vmatprep.subr.mxu0 0.0
    %558 = vmatpush1.msra.mxu0 0.0
    %559 = vmatprep.subr.mxu0 0.0
    %560 = vmatpush1.msra.mxu0 0.0
    %561 = vmatprep.subr.mxu0 0.0
    %562 = vmatpush1.msra.mxu0 0.0
    %563 = vmatprep.subr.mxu0 0.0
    %564 = vmatpush1.msra.mxu0 0.0
    %565 = vmatprep.subr.mxu0 0.0
    %566 = vmatpush1.msra.mxu0 0.0
    %567 = vmatprep.subr.mxu0 0.0
    %568 = vmatpush1.msra.mxu0 0.0
    %569 = vmatprep.subr.mxu0 0.0
    %570 = vmatpush1.msra.mxu0 0.0
    %571 = vmatprep.subr.mxu0 0.0
    %572 = vmatpush1.msra.mxu0 0.0
    %573 = vmatprep.subr.mxu0 0.0
    %574 = vmatpush1.msra.mxu0 0.0
    %575 = vmatprep.subr.mxu0 0.0
    %576 = vmatpush1.msra.mxu0 0.0
    %577 = vmatprep.subr.mxu0 0.0
    %578 = vmatpush1.msra.mxu0 0.0
    %579 = vmatprep.subr.mxu0 0.0
    %580 = vmatpush1.msra.mxu0 0.0
    %581 = vmatprep.subr.mxu0 0.0
    %582 = vmatpush1.msra.mxu0 0.0
    %583 = vmatprep.subr.mxu0 0.0
    %584 = vmatpush1.msra.mxu0 0.0
    %585 = vmatprep.subr.mxu0 0.0
    %586 = vmatpush1.msra.mxu0 0.0
    %587 = vmatprep.subr.mxu0 0.0
    %588 = vmatpush1.msra.mxu0 0.0
    %589 = vmatprep.subr.mxu0 0.0
    %590 = vmatpush1.msra.mxu0 0.0
    %591 = vmatprep.subr.mxu0 0.0
    %592 = vmatpush1.msra.mxu0 0.0
    %593 = vmatprep.subr.mxu0 0.0
    %594 = vmatpush1.msra.mxu0 0.0
    %595 = vmatprep.subr.mxu0 0.0
    %596 = vmatpush1.msra.mxu0 0.0
    %597 = vmatprep.subr.mxu0 0.0
    %598 = vmatpush1.msra.mxu0 0.0
    %599 = vmatprep.subr.mxu0 0.0
    %600 = vmatpush1.msra.mxu0 0.0
    %601 = vmatprep.subr.mxu0 0.0
    %602 = vmatpush1.msra.mxu0 0.0
    %603 = vmatprep.subr.mxu0 0.0
    %604 = vmatpush1.msra.mxu0 0.0
    %605 = vmatprep.subr.mxu0 0.0
    %606 = vmatpush1.msra.mxu0 0.0
    %607 = vmatprep.subr.mxu0 0.0
    %608 = vmatpush1.msra.mxu0 0.0
    %609 = vmatprep.subr.mxu0 0.0
    %610 = vmatpush1.msra.mxu0 0.0
    %611 = vmatprep.subr.mxu0 0.0
    %612 = vmatpush1.msra.mxu0 0.0
    %613 = vmatprep.mubr.f32.mxu0 0.0
    %614 = vmatmul.mubr.f32.gmra.mrb[0].mxu0 %v547
    %v615 = vpop.f32.mrb[0].mxu0
    %v616 = vadd.f32 0.0, %v615
    %v617 = vpop.f32.mrb[0].mxu0
    %618 = vdwg.mxu0
    %v619 = vld [vmem:[#allocation6 + $0x10] sm:$0xff]
    %v620 = vld [vmem:[#allocation6 + $0x28] sm:$0xff]
    %v621 = vld [vmem:[#allocation6 + $0x40] sm:$0xff]
    %v622 = vld [vmem:[#allocation6 + $0x58] sm:$0xff]
    %v623 = vld [vmem:[#allocation6 + $0x70] sm:$0xff]
    %v624 = vld [vmem:[#allocation6 + $0x88] sm:$0xff]
    %v625 = vld [vmem:[#allocation6 + $0xa0] sm:$0xff]
    %v626 = vld [vmem:[#allocation6 + $0xb8] sm:$0xff]
    %v627 = vld [vmem:[#allocation6 + $0xd0] sm:$0xff]
    %v628 = vld [vmem:[#allocation6 + $0xe8] sm:$0xff]
    %v629 = vld [vmem:[#allocation6 + $0x100] sm:$0xff]
    %v630 = vld [vmem:[#allocation6 + $0x118] sm:$0xff]
    %v631 = vld [vmem:[#allocation6 + $0x130] sm:$0xff]
    %v632 = vld [vmem:[#allocation6 + $0x148] sm:$0xff]
    %v633 = vld [vmem:[#allocation6 + $0x160] sm:$0xff]
    %v634 = vld [vmem:[#allocation6 + $0x178] sm:$0xff]
    %v635 = vld [vmem:[%s7 + $0x3] sm:$0x1]
    %v636 = vlaneseq
    %v637 = vshrl.u32 %v636, 7
    %v638 = vsub.s32 0, %v637
    %v639 = vrot.slane %v635, %v638
    %640 = vmatprep.subr.mxu0 0.0
    %641 = vmatpush1.msra.mxu0 %v619
    %642 = vmatprep.subr.mxu0 0.0
    %643 = vmatpush1.msra.mxu0 %v620
    %644 = vmatprep.subr.mxu0 0.0
    %645 = vmatpush1.msra.mxu0 %v621
    %646 = vmatprep.subr.mxu0 0.0
    %647 = vmatpush1.msra.mxu0 %v622
    %648 = vmatprep.subr.mxu0 0.0
    %649 = vmatpush1.msra.mxu0 %v623
    %650 = vmatprep.subr.mxu0 0.0
    %651 = vmatpush1.msra.mxu0 %v624
    %652 = vmatprep.subr.mxu0 0.0
    %653 = vmatpush1.msra.mxu0 %v625
    %654 = vmatprep.subr.mxu0 0.0
    %655 = vmatpush1.msra.mxu0 %v626
    %656 = vmatprep.subr.mxu0 0.0
    %657 = vmatpush1.msra.mxu0 %v627
    %658 = vmatprep.subr.mxu0 0.0
    %659 = vmatpush1.msra.mxu0 %v628
    %660 = vmatprep.subr.mxu0 0.0
    %661 = vmatpush1.msra.mxu0 %v629
    %662 = vmatprep.subr.mxu0 0.0
    %663 = vmatpush1.msra.mxu0 %v630
    %664 = vmatprep.subr.mxu0 0.0
    %665 = vmatpush1.msra.mxu0 %v631
    %666 = vmatprep.subr.mxu0 0.0
    %667 = vmatpush1.msra.mxu0 %v632
    %668 = vmatprep.subr.mxu0 0.0
    %669 = vmatpush1.msra.mxu0 %v633
    %670 = vmatprep.subr.mxu0 0.0
    %671 = vmatpush1.msra.mxu0 %v634
    %672 = vmatprep.subr.mxu0 0.0
    %673 = vmatpush1.msra.mxu0 0.0
    %674 = vmatprep.subr.mxu0 0.0
    %675 = vmatpush1.msra.mxu0 0.0
    %676 = vmatprep.subr.mxu0 0.0
    %677 = vmatpush1.msra.mxu0 0.0
    %678 = vmatprep.subr.mxu0 0.0
    %679 = vmatpush1.msra.mxu0 0.0
    %680 = vmatprep.subr.mxu0 0.0
    %681 = vmatpush1.msra.mxu0 0.0
    %682 = vmatprep.subr.mxu0 0.0
    %683 = vmatpush1.msra.mxu0 0.0
    %684 = vmatprep.subr.mxu0 0.0
    %685 = vmatpush1.msra.mxu0 0.0
    %686 = vmatprep.subr.mxu0 0.0
    %687 = vmatpush1.msra.mxu0 0.0
    %688 = vmatprep.subr.mxu0 0.0
    %689 = vmatpush1.msra.mxu0 0.0
    %690 = vmatprep.subr.mxu0 0.0
    %691 = vmatpush1.msra.mxu0 0.0
    %692 = vmatprep.subr.mxu0 0.0
    %693 = vmatpush1.msra.mxu0 0.0
    %694 = vmatprep.subr.mxu0 0.0
    %695 = vmatpush1.msra.mxu0 0.0
    %696 = vmatprep.subr.mxu0 0.0
    %697 = vmatpush1.msra.mxu0 0.0
    %698 = vmatprep.subr.mxu0 0.0
    %699 = vmatpush1.msra.mxu0 0.0
    %700 = vmatprep.subr.mxu0 0.0
    %701 = vmatpush1.msra.mxu0 0.0
    %702 = vmatprep.subr.mxu0 0.0
    %703 = vmatpush1.msra.mxu0 0.0
    %704 = vmatprep.mubr.f32.mxu0 0.0
    %705 = vmatmul.mubr.f32.gmra.mrb[0].mxu0 %v616
    %v706 = vpop.f32.mrb[0].mxu0
    %v707 = vadd.f32 %v639, %v706
    %v708 = vpop.f32.mrb[0].mxu0
    %709 = vdwg.mxu0
    %v710 = vmax.f32 %v707, 0.0
    %v711 = vld [vmem:[#allocation7] sm:$0xff]
    %v712 = vld [vmem:[#allocation7 + $0x8] sm:$0xff]
    %v713 = vld [vmem:[#allocation7 + $0x10] sm:$0xff]
    %v714 = vld [vmem:[#allocation7 + $0x18] sm:$0xff]
    %v715 = vld [vmem:[#allocation7 + $0x20] sm:$0xff]
    %v716 = vld [vmem:[#allocation7 + $0x28] sm:$0xff]
    %v717 = vld [vmem:[#allocation7 + $0x30] sm:$0xff]
    %v718 = vld [vmem:[#allocation7 + $0x38] sm:$0xff]
    %v719 = vld [vmem:[#allocation7 + $0x40] sm:$0xff]
    %v720 = vld [vmem:[#allocation7 + $0x48] sm:$0xff]
    %v721 = vld [vmem:[#allocation7 + $0x50] sm:$0xff]
    %v722 = vld [vmem:[#allocation7 + $0x58] sm:$0xff]
    %v723 = vld [vmem:[#allocation7 + $0x60] sm:$0xff]
    %v724 = vld [vmem:[#allocation7 + $0x68] sm:$0xff]
    %v725 = vld [vmem:[#allocation7 + $0x70] sm:$0xff]
    %v726 = vld [vmem:[#allocation7 + $0x78] sm:$0xff]
    %v727 = vld [vmem:[%s7 + $0x4] sm:$0x1]
    %v728 = vlaneseq
    %v729 = vshrl.u32 %v728, 7
    %v730 = vsub.s32 0, %v729
    %v731 = vrot.slane %v727, %v730
    %732 = vmatprep.subr.mxu0 0.0
    %733 = vmatpush1.msra.mxu0 %v711
    %734 = vmatprep.subr.mxu0 0.0
    %735 = vmatpush1.msra.mxu0 %v712
    %736 = vmatprep.subr.mxu0 0.0
    %737 = vmatpush1.msra.mxu0 %v713
    %738 = vmatprep.subr.mxu0 0.0
    %739 = vmatpush1.msra.mxu0 %v714
    %740 = vmatprep.subr.mxu0 0.0
    %741 = vmatpush1.msra.mxu0 %v715
    %742 = vmatprep.subr.mxu0 0.0
    %743 = vmatpush1.msra.mxu0 %v716
    %744 = vmatprep.subr.mxu0 0.0
    %745 = vmatpush1.msra.mxu0 %v717
    %746 = vmatprep.subr.mxu0 0.0
    %747 = vmatpush1.msra.mxu0 %v718
    %748 = vmatprep.subr.mxu0 0.0
    %749 = vmatpush1.msra.mxu0 %v719
    %750 = vmatprep.subr.mxu0 0.0
    %751 = vmatpush1.msra.mxu0 %v720
    %752 = vmatprep.subr.mxu0 0.0
    %753 = vmatpush1.msra.mxu0 %v721
    %754 = vmatprep.subr.mxu0 0.0
    %755 = vmatpush1.msra.mxu0 %v722
    %756 = vmatprep.subr.mxu0 0.0
    %757 = vmatpush1.msra.mxu0 %v723
    %758 = vmatprep.subr.mxu0 0.0
    %759 = vmatpush1.msra.mxu0 %v724
    %760 = vmatprep.subr.mxu0 0.0
    %761 = vmatpush1.msra.mxu0 %v725
    %762 = vmatprep.subr.mxu0 0.0
    %763 = vmatpush1.msra.mxu0 %v726
    %764 = vmatprep.subr.mxu0 0.0
    %765 = vmatpush1.msra.mxu0 0.0
    %766 = vmatprep.subr.mxu0 0.0
    %767 = vmatpush1.msra.mxu0 0.0
    %768 = vmatprep.subr.mxu0 0.0
    %769 = vmatpush1.msra.mxu0 0.0
    %770 = vmatprep.subr.mxu0 0.0
    %771 = vmatpush1.msra.mxu0 0.0
    %772 = vmatprep.subr.mxu0 0.0
    %773 = vmatpush1.msra.mxu0 0.0
    %774 = vmatprep.subr.mxu0 0.0
    %775 = vmatpush1.msra.mxu0 0.0
    %776 = vmatprep.subr.mxu0 0.0
    %777 = vmatpush1.msra.mxu0 0.0
    %778 = vmatprep.subr.mxu0 0.0
    %779 = vmatpush1.msra.mxu0 0.0
    %780 = vmatprep.subr.mxu0 0.0
    %781 = vmatpush1.msra.mxu0 0.0
    %782 = vmatprep.subr.mxu0 0.0
    %783 = vmatpush1.msra.mxu0 0.0
    %784 = vmatprep.subr.mxu0 0.0
    %785 = vmatpush1.msra.mxu0 0.0
    %786 = vmatprep.subr.mxu0 0.0
    %787 = vmatpush1.msra.mxu0 0.0
    %788 = vmatprep.subr.mxu0 0.0
    %789 = vmatpush1.msra.mxu0 0.0
    %790 = vmatprep.subr.mxu0 0.0
    %791 = vmatpush1.msra.mxu0 0.0
    %792 = vmatprep.subr.mxu0 0.0
    %793 = vmatpush1.msra.mxu0 0.0
    %794 = vmatprep.subr.mxu0 0.0
    %795 = vmatpush1.msra.mxu0 0.0
    %796 = vmatprep.mubr.f32.mxu0 0.0
    %797 = vmatmul.mubr.f32.gmra.mrb[0].mxu0 %v710
    %v798 = vpop.f32.mrb[0].mxu0
    %v799 = vadd.f32 %v731, %v798
    %v800 = vpop.f32.mrb[0].mxu0
    %801 = vdwg.mxu0
    %802 = vst [vmem:[#allocation10] sm:$0xff] %v799
    // Predicated region
    $region46: #{tpu_custom_call.1} parent=1 // pred_check
      _
    $region47: #{tpu_custom_call.1} parent=1 // pred_check_branch
      %804 = sbr.rel (0) target = $region49
    $region48: #{tpu_custom_call.1} parent=1 // pred_region
      %s806 = ssub.s32 256, 256
      %807 = vsyncadd [#allocation4], %s806
      %s808 = sshll.u32 [#allocation9], 4
      %s809 = int_to_ptr.vmem [resolvable:$true] %s808
      %814 = dma.vmem_to_hbm [thread:$0]  %s809, 256, %s8, [#allocation4], 128, 128, 8
    $region49: #{tpu_custom_call.1} parent=1 // pred_fallthru
      _
    // Predicated region
    $region50: #{tpu_custom_call.1} parent=1 // pred_check
      _
    $region51: #{tpu_custom_call.1} parent=1 // pred_check_branch
      %816 = sbr.rel (0) target = $region53
    $region52: #{tpu_custom_call.1} parent=1 // pred_region
      %s818 = ssub.s32 128, 128
      %819 = vsyncadd [#allocation11], %s818
      %s821 = sshll.u32 [#allocation10], 4
      %s822 = int_to_ptr.vmem [resolvable:$true] %s821
      %824 = dma.vmem_to_hbm [thread:$0]  %s822, 128, %s9, [#allocation11]
    $region53: #{tpu_custom_call.1} parent=1 // pred_fallthru
      _
    // Predicated region
    $region54: #{tpu_custom_call.1} parent=1 // pred_check
      _
    $region55: #{tpu_custom_call.1} parent=1 // pred_check_branch
      %826 = sbr.rel (0) target = $region57
    $region56: #{tpu_custom_call.1} parent=1 // pred_region
      %827 = dma.done [#allocation4], 256
    $region57: #{tpu_custom_call.1} parent=1 // pred_fallthru
      _
    // Predicated region
    $region58: #{tpu_custom_call.1} parent=1 // pred_check
      _
    $region59: #{tpu_custom_call.1} parent=1 // pred_check_branch
      %829 = sbr.rel (0) target = $region61
    $region60: #{tpu_custom_call.1} parent=1 // pred_region
      %830 = dma.done [#allocation11], 128
    $region61: #{tpu_custom_call.1} parent=1 // pred_fallthru
      _
    %831 = vsyncpa [#allocation3], 1
    %832 = vsyncpa [#allocation8], 1
    %833 = vsyncpa [#allocation4], 1
    %834 = vsyncpa [#allocation11], 1
    %835 = vsyncpa [#allocation5], 1

</llo_original>
